<compile_context>
chip_gen: v5e
topology: v5e:2x2
jax: 0.10.0
libtpu: 0.0.40
codegen_flags: <defaults>
</compile_context>

<pallas_src>
import functools

import jax
import jax.numpy as jnp
from jax.experimental import pallas as pl
from jax.experimental.pallas import tpu as pltpu


def _round_up(x, m):
    return (x + m - 1) // m * m


def _make_kernel(TB, Lp, D, Kmax, Co_total, C_pad):
    """Fused conv(im2col) + bias/mask + time-max + relu + fc kernel."""
    KD = Kmax * D

    def kernel(emb_ref, wc_ref, bm_ref, fw_ref, fb_ref, out_ref):
        # emb_ref: (TB, Lp + Kmax - 1, D)  bf16   zero-padded embedded tokens
        # wc_ref : (Kmax*D, Co_total)      bf16   all conv branches packed on columns
        # bm_ref : (Lp, Co_total)          f32    conv bias + (-1e30) time-validity mask
        # fw_ref : (Co_total, C_pad)       bf16   fc weight (zero rows/cols in padding)
        # fb_ref : (1, C_pad)              f32    fc bias
        # out_ref: (TB, C_pad)             f32    padded logits
        emb = emb_ref[...]

        # im2col: Kmax shifted views concatenated on the lane axis -> one fat matmul.
        win = jnp.concatenate(
            [emb[:, k:k + Lp, :] for k in range(Kmax)], axis=-1
        )                                           # (TB, Lp, Kmax*D)
        win2d = win.reshape(TB * Lp, KD)            # collapse leading dims (Lp % sublane == 0)

        conv = jnp.dot(win2d, wc_ref[...],
                       preferred_element_type=jnp.float32)   # (TB*Lp, Co_total)
        conv = conv.reshape(TB, Lp, Co_total)

        # bias + additive time mask (invalid positions -> -1e30), then max over time.
        conv = conv + bm_ref[...][None, :, :]
        feat = jnp.max(conv, axis=1)                # (TB, Co_total)
        feat = jnp.maximum(feat, 0.0)               # ReLU (commutes with max)

        # dropout is identity at inference; fused final FC.
        logits = jnp.dot(feat.astype(fw_ref.dtype), fw_ref[...],
                         preferred_element_type=jnp.float32)  # (TB, C_pad)
        out_ref[...] = (logits + fb_ref[...]).astype(out_ref.dtype)

    return kernel


def _pack_params(params, *, L, D, Co, Ks, C, Lp):
    """Pack per-branch conv/fc params into lane-dense, zero-padded matrices."""
    Kmax = max(Ks)
    n_ks = len(Ks)
    Co_total = _round_up(n_ks * Co, 128)
    C_pad = _round_up(C, 128)

    wc = jnp.zeros((Kmax * D, Co_total), jnp.float32)
    bm = jnp.zeros((Lp, Co_total), jnp.float32)
    t = jnp.arange(Lp, dtype=jnp.int32)[:, None]
    for i, K in enumerate(Ks):
        w = params["conv_w"][i]                       # (K, D, Co)
        wc = wc.at[:K * D, i * Co:(i + 1) * Co].set(w.reshape(K * D, Co))
        Lout = L - K + 1
        col = jnp.where(t < Lout, params["conv_b"][i], jnp.float32(-1e30))  # (Lp, Co)
        bm = bm.at[:, i * Co:(i + 1) * Co].set(col)

    fw = jnp.zeros((Co_total, C_pad), jnp.float32)
    fw = fw.at[:n_ks * Co, :C].set(params["fc_w"])
    fb = jnp.zeros((1, C_pad), jnp.float32)
    fb = fb.at[:, :C].set(params["fc_b"])

    return wc.astype(jnp.bfloat16), bm, fw.astype(jnp.bfloat16), fb, Co_total, C_pad


def cnn_text_forward(tokens, params, *, L, D, Co, Ks, C, TB=128):
    """tokens: (N, L) int32 token ids. Returns logits (N, C) float32."""
    N = tokens.shape[0]
    Kmax = max(Ks)
    Kmin = min(Ks)

    # Padded time-output length (multiple of 16 for clean bf16 sublane tiling) and
    # padded input sequence length so every shifted window slice is in bounds.
    Lp = _round_up(L - Kmin + 1, 16)
    L_in = Lp + Kmax - 1

    # Batch blocking: TB examples per grid step (pad tiny batches up to a sublane multiple).
    TB_eff = TB if N >= TB else _round_up(N, 8)
    N_pad = _round_up(N, TB_eff)

    # --- glue: embedding lookup (gather) + padding, in plain JAX ---
    emb = jnp.take(params["embed"], tokens, axis=0)            # (N, L, D) f32
    emb = jnp.pad(emb, ((0, N_pad - N), (0, L_in - L), (0, 0)))
    emb = emb.astype(jnp.bfloat16)
    # TODO(synk): at production scale, move the gather into the kernel via
    # scalar-prefetched token ids to avoid materializing the (N, L, D) tensor in HBM.

    wc, bm, fw, fb, Co_total, C_pad = _pack_params(
        params, L=L, D=D, Co=Co, Ks=Ks, C=C, Lp=Lp)

    kernel = _make_kernel(TB_eff, Lp, D, Kmax, Co_total, C_pad)

    out = pl.pallas_call(
        kernel,
        out_shape=jax.ShapeDtypeStruct((N_pad, C_pad), jnp.float32),
        grid_spec=pltpu.PrefetchScalarGridSpec(
            num_scalar_prefetch=0,
            grid=(N_pad // TB_eff,),
            in_specs=[
                pl.BlockSpec((TB_eff, L_in, D), lambda n: (n, 0, 0)),
                pl.BlockSpec((Kmax * D, Co_total), lambda n: (0, 0)),
                pl.BlockSpec((Lp, Co_total), lambda n: (0, 0)),
                pl.BlockSpec((Co_total, C_pad), lambda n: (0, 0)),
                pl.BlockSpec((1, C_pad), lambda n: (0, 0)),
            ],
            out_specs=pl.BlockSpec((TB_eff, C_pad), lambda n: (n, 0)),
        ),
        compiler_params=pltpu.CompilerParams(
            dimension_semantics=("parallel",),
            vmem_limit_bytes=64 * 1024 * 1024,
        ),
    )(emb, wc, bm, fw, fb)

    return out[:N, :C]


def init_params(key, *, V, D, Co, Ks, C):
    """Deterministic synthetic parameter init (shapes match the nn.Module)."""
    keys = jax.random.split(key, 2 * len(Ks) + 3)
    params = {}
    # nn.Embedding(V, D)
    params["embed"] = jax.random.normal(keys[0], (V, D), jnp.float32)
    conv_w, conv_b = [], []
    for i, K in enumerate(Ks):
        # nn.Conv2d(1, Co, (K, D)) weight (Co, 1, K, D) stored transposed as (K, D, Co)
        w = jax.random.normal(keys[1 + 2 * i], (K, D, Co), jnp.float32) * 0.1
        b = jax.random.normal(keys[2 + 2 * i], (1, Co), jnp.float32) * 0.1
        conv_w.append(w)
        conv_b.append(b)
    params["conv_w"] = conv_w
    params["conv_b"] = conv_b
    # nn.Linear(len(Ks)*Co, C): weight (C, len(Ks)*Co) stored transposed (len(Ks)*Co, C)
    params["fc_w"] = jax.random.normal(keys[-2], (len(Ks) * Co, C), jnp.float32) * 0.1
    params["fc_b"] = jax.random.normal(keys[-1], (1, C), jnp.float32) * 0.1
    return params


if __name__ == "__main__":
    # Small config consistent with CNN_Text's args.
    V = 50            # embed_num
    D = 32            # embed_dim
    C = 4             # class_num
    Co = 8            # kernel_num
    Ks = (3, 4, 5)    # kernel_sizes
    N = 2             # batch
    L = 16            # sequence length

    key = jax.random.PRNGKey(0)
    k_param, k_tok = jax.random.split(key)

    params = init_params(k_param, V=V, D=D, Co=Co, Ks=Ks, C=C)
    tokens = jax.random.randint(k_tok, (N, L), 0, V, dtype=jnp.int32)

    fwd = jax.jit(functools.partial(cnn_text_forward, L=L, D=D, Co=Co, Ks=Ks, C=C))
    logits = fwd(tokens, params)
    jax.block_until_ready(logits)

    assert logits.shape == (N, C), logits.shape
    assert logits.dtype == jnp.float32
    print("KERNEL_OK")
</pallas_src>

<mosaic_0001>
module attributes {stable_mosaic.version = 11 : i64} {
  func.func @kernel(%arg0: i32, %arg1: memref<8x20x32xbf16, #tpu.memory_space<vmem>>, %arg2: memref<160x128xbf16, #tpu.memory_space<vmem>>, %arg3: memref<16x128xf32, #tpu.memory_space<vmem>>, %arg4: memref<128x128xbf16, #tpu.memory_space<vmem>>, %arg5: memref<1x128xf32, #tpu.memory_space<vmem>>, %arg6: memref<8x128xf32, #tpu.memory_space<vmem>>) attributes {dimension_semantics = [#tpu.dimension_semantics<parallel>], iteration_bounds = array<i64: 1>, scalar_prefetch = 0 : i64, scratch_operands = 0 : i64, tpu.core_type = #tpu.core_type<tc>, window_params = [{transform_indices = @transform_0, window_bounds = array<i64: 8, 20, 32>}, {pipeline_mode = #tpu.pipeline_mode<synchronous>, transform_indices = @transform_1, window_bounds = array<i64: 160, 128>}, {pipeline_mode = #tpu.pipeline_mode<synchronous>, transform_indices = @transform_2, window_bounds = array<i64: 16, 128>}, {pipeline_mode = #tpu.pipeline_mode<synchronous>, transform_indices = @transform_3, window_bounds = array<i64: 128, 128>}, {pipeline_mode = #tpu.pipeline_mode<synchronous>, transform_indices = @transform_4, window_bounds = array<i64: 1, 128>}, {transform_indices = @transform_5, window_bounds = array<i64: 8, 128>}]} {
    %c0 = arith.constant 0 : index
    %c0_0 = arith.constant 0 : index
    %c0_1 = arith.constant 0 : index
    %0 = vector.load %arg1[%c0, %c0_0, %c0_1] : memref<8x20x32xbf16, #tpu.memory_space<vmem>>, vector<8x20x32xbf16>
    %1 = vector.extract_strided_slice %0 {offsets = [0, 0, 0], sizes = [8, 16, 32], strides = [1, 1, 1]} : vector<8x20x32xbf16> to vector<8x16x32xbf16>
    %2 = vector.extract_strided_slice %0 {offsets = [0, 1, 0], sizes = [8, 16, 32], strides = [1, 1, 1]} : vector<8x20x32xbf16> to vector<8x16x32xbf16>
    %3 = vector.extract_strided_slice %0 {offsets = [0, 2, 0], sizes = [8, 16, 32], strides = [1, 1, 1]} : vector<8x20x32xbf16> to vector<8x16x32xbf16>
    %4 = vector.extract_strided_slice %0 {offsets = [0, 3, 0], sizes = [8, 16, 32], strides = [1, 1, 1]} : vector<8x20x32xbf16> to vector<8x16x32xbf16>
    %5 = vector.extract_strided_slice %0 {offsets = [0, 4, 0], sizes = [8, 16, 32], strides = [1, 1, 1]} : vector<8x20x32xbf16> to vector<8x16x32xbf16>
    %6 = tpu.concatenate %1, %2, %3, %4, %5 in 2 : vector<8x16x32xbf16>, vector<8x16x32xbf16>, vector<8x16x32xbf16>, vector<8x16x32xbf16>, vector<8x16x32xbf16> -> vector<8x16x160xbf16>
    %7 = vector.shape_cast %6 : vector<8x16x160xbf16> to vector<128x160xbf16>
    %c0_2 = arith.constant 0 : index
    %c0_3 = arith.constant 0 : index
    %8 = vector.load %arg2[%c0_2, %c0_3] : memref<160x128xbf16, #tpu.memory_space<vmem>>, vector<160x128xbf16>
    %cst = arith.constant dense<0.000000e+00> : vector<128x128xf32>
    %9 = tpu.matmul %7, %8, %cst {dimension_numbers = #tpu.dot_dimension_numbers<[1], [0], [0], [1], [0, 0, 1, 1], [], []>} : vector<128x160xbf16>, vector<160x128xbf16>, vector<128x128xf32> -> vector<128x128xf32>
    %10 = vector.shape_cast %9 : vector<128x128xf32> to vector<8x16x128xf32>
    %c0_4 = arith.constant 0 : index
    %c0_5 = arith.constant 0 : index
    %11 = vector.load %arg3[%c0_4, %c0_5] : memref<16x128xf32, #tpu.memory_space<vmem>>, vector<16x128xf32>
    %12 = vector.shape_cast %11 : vector<16x128xf32> to vector<1x16x128xf32>
    %13 = vector.broadcast %12 : vector<1x16x128xf32> to vector<8x16x128xf32>
    %14 = arith.addf %10, %13 : vector<8x16x128xf32>
    %cst_6 = arith.constant dense<0xFF800000> : vector<8x128xf32>
    %15 = vector.multi_reduction <maximumf>, %14, %cst_6 [1] : vector<8x16x128xf32> to vector<8x128xf32>
    %cst_7 = arith.constant 0.000000e+00 : f32
    %16 = vector.broadcast %cst_7 : f32 to vector<8x128xf32>
    %17 = arith.maximumf %15, %16 : vector<8x128xf32>
    %18 = arith.truncf %17 : vector<8x128xf32> to vector<8x128xbf16>
    %c0_8 = arith.constant 0 : index
    %c0_9 = arith.constant 0 : index
    %19 = vector.load %arg4[%c0_8, %c0_9] : memref<128x128xbf16, #tpu.memory_space<vmem>>, vector<128x128xbf16>
    %cst_10 = arith.constant dense<0.000000e+00> : vector<8x128xf32>
    %20 = tpu.matmul %18, %19, %cst_10 {dimension_numbers = #tpu.dot_dimension_numbers<[1], [0], [0], [1], [0, 0, 1, 1], [], []>} : vector<8x128xbf16>, vector<128x128xbf16>, vector<8x128xf32> -> vector<8x128xf32>
    %c0_11 = arith.constant 0 : index
    %c0_12 = arith.constant 0 : index
    %21 = vector.load %arg5[%c0_11, %c0_12] : memref<1x128xf32, #tpu.memory_space<vmem>>, vector<1x128xf32>
    %22 = vector.broadcast %21 : vector<1x128xf32> to vector<8x128xf32>
    %23 = arith.addf %20, %22 : vector<8x128xf32>
    %c0_13 = arith.constant 0 : index
    %c0_14 = arith.constant 0 : index
    %24 = vector.load %arg6[%c0_13, %c0_14] : memref<8x128xf32, #tpu.memory_space<vmem>>, vector<8x128xf32>
    tpu.vector_store %arg6[%c0_13, %c0_14], %23 {strides = array<i32>} : memref<8x128xf32, #tpu.memory_space<vmem>>, vector<8x128xf32>,
    return
  }
  func.func @transform_0(%arg0: i32) -> (i32, i32, i32) {
    %c0_i32 = arith.constant 0 : i32
    %c0_i32_0 = arith.constant 0 : i32
    %c0_i32_1 = arith.constant 0 : i32
    return %arg0, %c0_i32, %c0_i32_0 : i32, i32, i32
  }
  func.func @transform_1(%arg0: i32) -> (i32, i32) {
    %c0_i32 = arith.constant 0 : i32
    %c0_i32_0 = arith.constant 0 : i32
    %c0_i32_1 = arith.constant 0 : i32
    return %c0_i32, %c0_i32_0 : i32, i32
  }
  func.func @transform_2(%arg0: i32) -> (i32, i32) {
    %c0_i32 = arith.constant 0 : i32
    %c0_i32_0 = arith.constant 0 : i32
    %c0_i32_1 = arith.constant 0 : i32
    return %c0_i32, %c0_i32_0 : i32, i32
  }
  func.func @transform_3(%arg0: i32) -> (i32, i32) {
    %c0_i32 = arith.constant 0 : i32
    %c0_i32_0 = arith.constant 0 : i32
    %c0_i32_1 = arith.constant 0 : i32
    return %c0_i32, %c0_i32_0 : i32, i32
  }
  func.func @transform_4(%arg0: i32) -> (i32, i32) {
    %c0_i32 = arith.constant 0 : i32
    %c0_i32_0 = arith.constant 0 : i32
    %c0_i32_1 = arith.constant 0 : i32
    return %c0_i32, %c0_i32_0 : i32, i32
  }
  func.func @transform_5(%arg0: i32) -> (i32, i32) {
    %c0_i32 = arith.constant 0 : i32
    %c0_i32_0 = arith.constant 0 : i32
    return %arg0, %c0_i32 : i32, i32
  }
}

</mosaic_0001>

<llo_original>
// kernel: cnn_text_forward.1
$region0: #{cnn_text_forward.1}
  #allocation0 [shape = 'u32[]', space=smem, size = 0x4, offset = 0x4, fixed_abs, tag = 'smem constant byte address 0x4 - core index']
  #allocation1 [shape = 'u32[72,128]{1,0:T(1,128)}', space=vmem, size = 0x9000, scoped, tag = 'internal scratch']
  %s0 = inlined_call_operand.vmem [shape: bf16[8,20,32], index: 0, kind: input, shape index: {}]
  %s1 = inlined_call_operand.vmem [shape: bf16[160,128], index: 1, kind: input, shape index: {}]
  %s2 = inlined_call_operand.vmem [shape: f32[16,128], index: 2, kind: input, shape index: {}]
  %s3 = inlined_call_operand.vmem [shape: bf16[128,128], index: 3, kind: input, shape index: {}]
  %s4 = inlined_call_operand.vmem [shape: f32[1,128], index: 4, kind: input, shape index: {}]
  %s5 = inlined_call_operand.vmem [shape: f32[8,128], index: 5, kind: output, shape index: {}]
  %s6 = sld [smem:[#allocation0]]
  $region30: #{cnn_text_forward.1} parent=0
    _
  %s8 = ssub.s32 1, %s6
  %s9 = scalar_select 0, %s8, %s6
  // Predicated region
  $region2: #{cnn_text_forward.1} parent=0 // pred_check
    _
  $region3: #{cnn_text_forward.1} parent=0 // pred_check_branch
    %11 = sbr.rel (0) target = $region5
  $region4: #{cnn_text_forward.1} parent=0 // pred_region
    _
  $region5: #{cnn_text_forward.1} parent=0 // pred_fallthru
    _
  // Predicated region
  $region6: #{cnn_text_forward.1} parent=0 // pred_check
    _
  $region7: #{cnn_text_forward.1} parent=0 // pred_check_branch
    %13 = sbr.rel (0) target = $region9
  $region8: #{cnn_text_forward.1} parent=0 // pred_region
    _
  $region9: #{cnn_text_forward.1} parent=0 // pred_fallthru
    _
  // Predicated region
  $region10: #{cnn_text_forward.1} parent=0 // pred_check
    _
  $region11: #{cnn_text_forward.1} parent=0 // pred_check_branch
    %15 = sbr.rel (0) target = $region13
  $region12: #{cnn_text_forward.1} parent=0 // pred_region
    _
  $region13: #{cnn_text_forward.1} parent=0 // pred_fallthru
    _
  // Predicated region
  $region14: #{cnn_text_forward.1} parent=0 // pred_check
    _
  $region15: #{cnn_text_forward.1} parent=0 // pred_check_branch
    %17 = sbr.rel (0) target = $region17
  $region16: #{cnn_text_forward.1} parent=0 // pred_region
    _
  $region17: #{cnn_text_forward.1} parent=0 // pred_fallthru
    _
  // Predicated region
  $region18: #{cnn_text_forward.1} parent=0 // pred_check
    _
  $region19: #{cnn_text_forward.1} parent=0 // pred_check_branch
    %19 = sbr.rel (0) target = $region21
  $region20: #{cnn_text_forward.1} parent=0 // pred_region
    _
  $region21: #{cnn_text_forward.1} parent=0 // pred_fallthru
    _
  %v21 = vld [vmem:[%s0] sm:$0xf]
  %v22 = vld [vmem:[%s0 + $0x4] sm:$0xf]
  %v23 = vld [vmem:[%s0 + $0x8] sm:$0x3]
  %v24 = vld [vmem:[%s0 + $0xc] sm:$0xf]
  %v25 = vld [vmem:[%s0 + $0x10] sm:$0xf]
  %v26 = vld [vmem:[%s0 + $0x14] sm:$0x3]
  %v27 = vld [vmem:[%s0 + $0x18] sm:$0xf]
  %v28 = vld [vmem:[%s0 + $0x1c] sm:$0xf]
  %v29 = vld [vmem:[%s0 + $0x20] sm:$0x3]
  %v30 = vld [vmem:[%s0 + $0x24] sm:$0xf]
  %v31 = vld [vmem:[%s0 + $0x28] sm:$0xf]
  %v32 = vld [vmem:[%s0 + $0x2c] sm:$0x3]
  %v33 = vld [vmem:[%s0 + $0x30] sm:$0xf]
  %v34 = vld [vmem:[%s0 + $0x34] sm:$0xf]
  %v35 = vld [vmem:[%s0 + $0x38] sm:$0x3]
  %v36 = vld [vmem:[%s0 + $0x3c] sm:$0xf]
  %v37 = vld [vmem:[%s0 + $0x40] sm:$0xf]
  %v38 = vld [vmem:[%s0 + $0x44] sm:$0x3]
  %v39 = vld [vmem:[%s0 + $0x48] sm:$0xf]
  %v40 = vld [vmem:[%s0 + $0x4c] sm:$0xf]
  %v41 = vld [vmem:[%s0 + $0x50] sm:$0x3]
  %v42 = vld [vmem:[%s0 + $0x54] sm:$0xf]
  %v43 = vld [vmem:[%s0 + $0x58] sm:$0xf]
  %v44 = vld [vmem:[%s0 + $0x5c] sm:$0x3]
  %v61 = vunpack.c.l.b16 %v21
  %v62 = vunpack.c.l.b16 %v22
  %v63 = vunpack.c.l.b16 %v24
  %v64 = vunpack.c.l.b16 %v25
  %v65 = vunpack.c.l.b16 %v27
  %v66 = vunpack.c.l.b16 %v28
  %v67 = vunpack.c.l.b16 %v30
  %v68 = vunpack.c.l.b16 %v31
  %v69 = vunpack.c.l.b16 %v33
  %v70 = vunpack.c.l.b16 %v34
  %v71 = vunpack.c.l.b16 %v36
  %v72 = vunpack.c.l.b16 %v37
  %v73 = vunpack.c.l.b16 %v39
  %v74 = vunpack.c.l.b16 %v40
  %v75 = vunpack.c.l.b16 %v42
  %v76 = vunpack.c.l.b16 %v43
  %v77 = vpack.c.b16 %v62, %v61
  %v78 = vpack.c.b16 %v64, %v63
  %v79 = vpack.c.b16 %v66, %v65
  %v80 = vpack.c.b16 %v68, %v67
  %v81 = vpack.c.b16 %v70, %v69
  %v82 = vpack.c.b16 %v72, %v71
  %v83 = vpack.c.b16 %v74, %v73
  %v84 = vpack.c.b16 %v76, %v75
  %v93 = vunpack.c.l.b16 %v23
  %v94 = vunpack.c.l.b16 %v26
  %v95 = vunpack.c.l.b16 %v29
  %v96 = vunpack.c.l.b16 %v32
  %v97 = vunpack.c.l.b16 %v35
  %v98 = vunpack.c.l.b16 %v38
  %v99 = vunpack.c.l.b16 %v41
  %v100 = vunpack.c.l.b16 %v44
  %v101 = vpack.c.b16 %v93, %v93
  %v102 = vpack.c.b16 %v94, %v94
  %v103 = vpack.c.b16 %v95, %v95
  %v104 = vpack.c.b16 %v96, %v96
  %v105 = vpack.c.b16 %v97, %v97
  %v106 = vpack.c.b16 %v98, %v98
  %v107 = vpack.c.b16 %v99, %v99
  %v108 = vpack.c.b16 %v100, %v100
  %vm109 = vsmask.f32 7424
  %v111 = vshrl.u32 %v77, 16
  %v113 = vshll.u32 %v77, 16
  %v115 = vrot.slane %v113, 1
  %v116 = vor.u32 %v111, %v115
  %v118 = vshll.u32 %v101, 16
  %v120 = vrot.slane %v118, 1
  %v121 = vsel %vm109, %v116, %v120
  %v123 = vshrl.u32 %v78, 16
  %v125 = vshll.u32 %v78, 16
  %v127 = vrot.slane %v125, 1
  %v128 = vor.u32 %v123, %v127
  %v130 = vshll.u32 %v102, 16
  %v132 = vrot.slane %v130, 1
  %v133 = vsel %vm109, %v128, %v132
  %v135 = vshrl.u32 %v79, 16
  %v137 = vshll.u32 %v79, 16
  %v139 = vrot.slane %v137, 1
  %v140 = vor.u32 %v135, %v139
  %v142 = vshll.u32 %v103, 16
  %v144 = vrot.slane %v142, 1
  %v145 = vsel %vm109, %v140, %v144
  %v147 = vshrl.u32 %v80, 16
  %v149 = vshll.u32 %v80, 16
  %v151 = vrot.slane %v149, 1
  %v152 = vor.u32 %v147, %v151
  %v154 = vshll.u32 %v104, 16
  %v156 = vrot.slane %v154, 1
  %v157 = vsel %vm109, %v152, %v156
  %v159 = vshrl.u32 %v81, 16
  %v161 = vshll.u32 %v81, 16
  %v163 = vrot.slane %v161, 1
  %v164 = vor.u32 %v159, %v163
  %v166 = vshll.u32 %v105, 16
  %v168 = vrot.slane %v166, 1
  %v169 = vsel %vm109, %v164, %v168
  %v171 = vshrl.u32 %v82, 16
  %v173 = vshll.u32 %v82, 16
  %v175 = vrot.slane %v173, 1
  %v176 = vor.u32 %v171, %v175
  %v178 = vshll.u32 %v106, 16
  %v180 = vrot.slane %v178, 1
  %v181 = vsel %vm109, %v176, %v180
  %v183 = vshrl.u32 %v83, 16
  %v185 = vshll.u32 %v83, 16
  %v187 = vrot.slane %v185, 1
  %v188 = vor.u32 %v183, %v187
  %v190 = vshll.u32 %v107, 16
  %v192 = vrot.slane %v190, 1
  %v193 = vsel %vm109, %v188, %v192
  %v195 = vshrl.u32 %v84, 16
  %v197 = vshll.u32 %v84, 16
  %v199 = vrot.slane %v197, 1
  %v200 = vor.u32 %v195, %v199
  %v202 = vshll.u32 %v108, 16
  %v204 = vrot.slane %v202, 1
  %v205 = vsel %vm109, %v200, %v204
  %206 = vrot.lane.b32.xlu0 %v121, 32
  %v207 = vpop.permute.xlu0 %206
  %208 = vrot.lane.b32.xlu0 %v133, 32
  %v209 = vpop.permute.xlu0 %208
  %210 = vrot.lane.b32.xlu0 %v145, 32
  %v211 = vpop.permute.xlu0 %210
  %212 = vrot.lane.b32.xlu0 %v157, 32
  %v213 = vpop.permute.xlu0 %212
  %214 = vrot.lane.b32.xlu0 %v169, 32
  %v215 = vpop.permute.xlu0 %214
  %216 = vrot.lane.b32.xlu0 %v181, 32
  %v217 = vpop.permute.xlu0 %216
  %218 = vrot.lane.b32.xlu0 %v193, 32
  %v219 = vpop.permute.xlu0 %218
  %220 = vrot.lane.b32.xlu0 %v205, 32
  %v221 = vpop.permute.xlu0 %220
  %vm222 = vcmask 1046528
  %v223 = vrot.slane %v77, 1
  %v224 = vrot.slane %v101, 1
  %v225 = vsel %vm222, %v223, %v224
  %v226 = vrot.slane %v78, 1
  %v227 = vrot.slane %v102, 1
  %v228 = vsel %vm222, %v226, %v227
  %v229 = vrot.slane %v79, 1
  %v230 = vrot.slane %v103, 1
  %v231 = vsel %vm222, %v229, %v230
  %v232 = vrot.slane %v80, 1
  %v233 = vrot.slane %v104, 1
  %v234 = vsel %vm222, %v232, %v233
  %v235 = vrot.slane %v81, 1
  %v236 = vrot.slane %v105, 1
  %v237 = vsel %vm222, %v235, %v236
  %v238 = vrot.slane %v82, 1
  %v239 = vrot.slane %v106, 1
  %v240 = vsel %vm222, %v238, %v239
  %v241 = vrot.slane %v83, 1
  %v242 = vrot.slane %v107, 1
  %v243 = vsel %vm222, %v241, %v242
  %v244 = vrot.slane %v84, 1
  %v245 = vrot.slane %v108, 1
  %v246 = vsel %vm222, %v244, %v245
  %247 = vrot.lane.b32.xlu0 %v225, 64
  %v248 = vpop.permute.xlu0 %247
  %249 = vrot.lane.b32.xlu0 %v228, 64
  %v250 = vpop.permute.xlu0 %249
  %251 = vrot.lane.b32.xlu0 %v231, 64
  %v252 = vpop.permute.xlu0 %251
  %253 = vrot.lane.b32.xlu0 %v234, 64
  %v254 = vpop.permute.xlu0 %253
  %255 = vrot.lane.b32.xlu0 %v237, 64
  %v256 = vpop.permute.xlu0 %255
  %257 = vrot.lane.b32.xlu0 %v240, 64
  %v258 = vpop.permute.xlu0 %257
  %259 = vrot.lane.b32.xlu0 %v243, 64
  %v260 = vpop.permute.xlu0 %259
  %261 = vrot.lane.b32.xlu0 %v246, 64
  %v262 = vpop.permute.xlu0 %261
  %vm263 = vsmask.f32 6400
  %v264 = vrot.slane %v111, 1
  %v265 = vrot.slane %v113, 2
  %v266 = vor.u32 %v264, %v265
  %v267 = vshrl.u32 %v101, 16
  %v269 = vrot.slane %v267, 1
  %v270 = vrot.slane %v118, 2
  %v271 = vor.u32 %v269, %v270
  %v272 = vsel %vm263, %v266, %v271
  %v273 = vrot.slane %v123, 1
  %v274 = vrot.slane %v125, 2
  %v275 = vor.u32 %v273, %v274
  %v276 = vshrl.u32 %v102, 16
  %v278 = vrot.slane %v276, 1
  %v279 = vrot.slane %v130, 2
  %v280 = vor.u32 %v278, %v279
  %v281 = vsel %vm263, %v275, %v280
  %v282 = vrot.slane %v135, 1
  %v283 = vrot.slane %v137, 2
  %v284 = vor.u32 %v282, %v283
  %v285 = vshrl.u32 %v103, 16
  %v287 = vrot.slane %v285, 1
  %v288 = vrot.slane %v142, 2
  %v289 = vor.u32 %v287, %v288
  %v290 = vsel %vm263, %v284, %v289
  %v291 = vrot.slane %v147, 1
  %v292 = vrot.slane %v149, 2
  %v293 = vor.u32 %v291, %v292
  %v294 = vshrl.u32 %v104, 16
  %v296 = vrot.slane %v294, 1
  %v297 = vrot.slane %v154, 2
  %v298 = vor.u32 %v296, %v297
  %v299 = vsel %vm263, %v293, %v298
  %v300 = vrot.slane %v159, 1
  %v301 = vrot.slane %v161, 2
  %v302 = vor.u32 %v300, %v301
  %v303 = vshrl.u32 %v105, 16
  %v305 = vrot.slane %v303, 1
  %v306 = vrot.slane %v166, 2
  %v307 = vor.u32 %v305, %v306
  %v308 = vsel %vm263, %v302, %v307
  %v309 = vrot.slane %v171, 1
  %v310 = vrot.slane %v173, 2
  %v311 = vor.u32 %v309, %v310
  %v312 = vshrl.u32 %v106, 16
  %v314 = vrot.slane %v312, 1
  %v315 = vrot.slane %v178, 2
  %v316 = vor.u32 %v314, %v315
  %v317 = vsel %vm263, %v311, %v316
  %v318 = vrot.slane %v183, 1
  %v319 = vrot.slane %v185, 2
  %v320 = vor.u32 %v318, %v319
  %v321 = vshrl.u32 %v107, 16
  %v323 = vrot.slane %v321, 1
  %v324 = vrot.slane %v190, 2
  %v325 = vor.u32 %v323, %v324
  %v326 = vsel %vm263, %v320, %v325
  %v327 = vrot.slane %v195, 1
  %v328 = vrot.slane %v197, 2
  %v329 = vor.u32 %v327, %v328
  %v330 = vshrl.u32 %v108, 16
  %v332 = vrot.slane %v330, 1
  %v333 = vrot.slane %v202, 2
  %v334 = vor.u32 %v332, %v333
  %v335 = vsel %vm263, %v329, %v334
  %336 = vrot.lane.b32.xlu0 %v272, 96
  %v337 = vpop.permute.xlu0 %336
  %338 = vrot.lane.b32.xlu0 %v281, 96
  %v339 = vpop.permute.xlu0 %338
  %340 = vrot.lane.b32.xlu0 %v290, 96
  %v341 = vpop.permute.xlu0 %340
  %342 = vrot.lane.b32.xlu0 %v299, 96
  %v343 = vpop.permute.xlu0 %342
  %344 = vrot.lane.b32.xlu0 %v308, 96
  %v345 = vpop.permute.xlu0 %344
  %346 = vrot.lane.b32.xlu0 %v317, 96
  %v347 = vpop.permute.xlu0 %346
  %348 = vrot.lane.b32.xlu0 %v326, 96
  %v349 = vpop.permute.xlu0 %348
  %350 = vrot.lane.b32.xlu0 %v335, 96
  %v351 = vpop.permute.xlu0 %350
  %vm352 = vcmask 1045504
  %v353 = vrot.slane %v77, 2
  %v354 = vrot.slane %v101, 2
  %v355 = vsel %vm352, %v353, %v354
  %v356 = vrot.slane %v78, 2
  %v357 = vrot.slane %v102, 2
  %v358 = vsel %vm352, %v356, %v357
  %v359 = vrot.slane %v79, 2
  %v360 = vrot.slane %v103, 2
  %v361 = vsel %vm352, %v359, %v360
  %v362 = vrot.slane %v80, 2
  %v363 = vrot.slane %v104, 2
  %v364 = vsel %vm352, %v362, %v363
  %v365 = vrot.slane %v81, 2
  %v366 = vrot.slane %v105, 2
  %v367 = vsel %vm352, %v365, %v366
  %v368 = vrot.slane %v82, 2
  %v369 = vrot.slane %v106, 2
  %v370 = vsel %vm352, %v368, %v369
  %v371 = vrot.slane %v83, 2
  %v372 = vrot.slane %v107, 2
  %v373 = vsel %vm352, %v371, %v372
  %v374 = vrot.slane %v84, 2
  %v375 = vrot.slane %v108, 2
  %v376 = vsel %vm352, %v374, %v375
  %vm377 = vcmask 261120
  %v379 = vsel %vm377, %v77, %v207
  %v381 = vsel %vm377, %v78, %v209
  %v383 = vsel %vm377, %v79, %v211
  %v385 = vsel %vm377, %v80, %v213
  %v387 = vsel %vm377, %v81, %v215
  %v389 = vsel %vm377, %v82, %v217
  %v391 = vsel %vm377, %v83, %v219
  %v393 = vsel %vm377, %v84, %v221
  %vm394 = vcmask 523264
  %v396 = vsel %vm394, %v379, %v248
  %v398 = vsel %vm394, %v381, %v250
  %v400 = vsel %vm394, %v383, %v252
  %v402 = vsel %vm394, %v385, %v254
  %v404 = vsel %vm394, %v387, %v256
  %v406 = vsel %vm394, %v389, %v258
  %v408 = vsel %vm394, %v391, %v260
  %v410 = vsel %vm394, %v393, %v262
  %vm411 = vcmask 785408
  %v413 = vsel %vm411, %v396, %v337
  %v416 = vsel %vm411, %v398, %v339
  %v419 = vsel %vm411, %v400, %v341
  %v422 = vsel %vm411, %v402, %v343
  %v425 = vsel %vm411, %v404, %v345
  %v428 = vsel %vm411, %v406, %v347
  %v431 = vsel %vm411, %v408, %v349
  %v434 = vsel %vm411, %v410, %v351
  %v436 = vld [vmem:[%s1] sm:$0xf]
  %v437 = vld [vmem:[%s1 + $0x4] sm:$0xf]
  %v438 = vld [vmem:[%s1 + $0x8] sm:$0xf]
  %v439 = vld [vmem:[%s1 + $0xc] sm:$0xf]
  %v440 = vld [vmem:[%s1 + $0x10] sm:$0xf]
  %v441 = vld [vmem:[%s1 + $0x14] sm:$0xf]
  %v442 = vld [vmem:[%s1 + $0x18] sm:$0xf]
  %v443 = vld [vmem:[%s1 + $0x1c] sm:$0xf]
  %v444 = vld [vmem:[%s1 + $0x20] sm:$0xf]
  %v445 = vld [vmem:[%s1 + $0x24] sm:$0xf]
  %v446 = vld [vmem:[%s1 + $0x28] sm:$0xf]
  %v447 = vld [vmem:[%s1 + $0x2c] sm:$0xf]
  %v448 = vld [vmem:[%s1 + $0x30] sm:$0xf]
  %v449 = vld [vmem:[%s1 + $0x34] sm:$0xf]
  %v450 = vld [vmem:[%s1 + $0x38] sm:$0xf]
  %v451 = vld [vmem:[%s1 + $0x3c] sm:$0xf]
  %v452 = vld [vmem:[%s1 + $0x40] sm:$0xf]
  %v453 = vld [vmem:[%s1 + $0x44] sm:$0xf]
  %v454 = vld [vmem:[%s1 + $0x48] sm:$0xf]
  %v455 = vld [vmem:[%s1 + $0x4c] sm:$0xf]
  %v476 = vunpack.c.l.b16 %v436
  %v477 = vunpack.c.l.b16 %v437
  %v478 = vunpack.c.l.b16 %v438
  %v479 = vunpack.c.l.b16 %v439
  %v480 = vunpack.c.l.b16 %v440
  %v481 = vunpack.c.l.b16 %v441
  %v482 = vunpack.c.l.b16 %v442
  %v483 = vunpack.c.l.b16 %v443
  %v484 = vunpack.c.l.b16 %v444
  %v485 = vunpack.c.l.b16 %v445
  %v486 = vunpack.c.l.b16 %v446
  %v487 = vunpack.c.l.b16 %v447
  %v488 = vunpack.c.l.b16 %v448
  %v489 = vunpack.c.l.b16 %v449
  %v490 = vunpack.c.l.b16 %v450
  %v491 = vunpack.c.l.b16 %v451
  %v492 = vunpack.c.l.b16 %v452
  %v493 = vunpack.c.l.b16 %v453
  %v494 = vunpack.c.l.b16 %v454
  %v495 = vunpack.c.l.b16 %v455
  %v496 = vpack.c.b16 %v477, %v476
  %v497 = vpack.c.b16 %v479, %v478
  %v498 = vpack.c.b16 %v481, %v480
  %v499 = vpack.c.b16 %v483, %v482
  %v500 = vpack.c.b16 %v485, %v484
  %v501 = vpack.c.b16 %v487, %v486
  %v502 = vpack.c.b16 %v489, %v488
  %v503 = vpack.c.b16 %v491, %v490
  %v504 = vpack.c.b16 %v493, %v492
  %v505 = vpack.c.b16 %v495, %v494
  %v517 = vsel %vm377, %v355, 0
  %v520 = vsel %vm377, %v358, 0
  %v523 = vsel %vm377, %v361, 0
  %v526 = vsel %vm377, %v364, 0
  %v529 = vsel %vm377, %v367, 0
  %v532 = vsel %vm377, %v370, 0
  %v535 = vsel %vm377, %v373, 0
  %v538 = vsel %vm377, %v376, 0
  %540 = vmatpush.bf16.msra.mxu0 %v503
  %541 = vmatpush.bf16.msra.mxu0 %v502
  %542 = vmatpush.bf16.msra.mxu0 %v501
  %543 = vmatpush.bf16.msra.mxu0 %v500
  %544 = vmatpush.bf16.msra.mxu0 %v499
  %545 = vmatpush.bf16.msra.mxu0 %v498
  %546 = vmatpush.bf16.msra.mxu0 %v497
  %547 = vmatpush.bf16.msra.mxu0 %v496
  %548 = vmatmul.bf16.gmra.mxu0 %v413
  %v549 = vpop.f32.mrf.mxu0
  %v550 = vadd.f32 0.0, %v549
  %v551 = vpop.f32.mrf.mxu0
  %v552 = vadd.f32 0.0, %v551
  %553 = vmatmul.bf16.gmra.mxu0 %v416
  %v554 = vpop.f32.mrf.mxu0
  %v555 = vadd.f32 0.0, %v554
  %v556 = vpop.f32.mrf.mxu0
  %v557 = vadd.f32 0.0, %v556
  %558 = vmatmul.bf16.gmra.mxu0 %v419
  %v559 = vpop.f32.mrf.mxu0
  %v560 = vadd.f32 0.0, %v559
  %v561 = vpop.f32.mrf.mxu0
  %v562 = vadd.f32 0.0, %v561
  %563 = vmatmul.bf16.gmra.mxu0 %v422
  %v564 = vpop.f32.mrf.mxu0
  %v565 = vadd.f32 0.0, %v564
  %v566 = vpop.f32.mrf.mxu0
  %v567 = vadd.f32 0.0, %v566
  %568 = vmatmul.bf16.gmra.mxu0 %v425
  %v569 = vpop.f32.mrf.mxu0
  %v570 = vadd.f32 0.0, %v569
  %v571 = vpop.f32.mrf.mxu0
  %v572 = vadd.f32 0.0, %v571
  %573 = vmatmul.bf16.gmra.mxu0 %v428
  %v574 = vpop.f32.mrf.mxu0
  %v575 = vadd.f32 0.0, %v574
  %v576 = vpop.f32.mrf.mxu0
  %v577 = vadd.f32 0.0, %v576
  %578 = vmatmul.bf16.gmra.mxu0 %v431
  %v579 = vpop.f32.mrf.mxu0
  %v580 = vadd.f32 0.0, %v579
  %v581 = vpop.f32.mrf.mxu0
  %v582 = vadd.f32 0.0, %v581
  %583 = vmatmul.bf16.gmra.mxu0 %v434
  %v584 = vpop.f32.mrf.mxu0
  %v585 = vadd.f32 0.0, %v584
  %v586 = vpop.f32.mrf.mxu0
  %v587 = vadd.f32 0.0, %v586
  %588 = vdwg.mxu0
  %589 = vmatpush.bf16.msra.mxu0 0
  %590 = vmatpush.bf16.msra.mxu0 0
  %591 = vmatpush.bf16.msra.mxu0 0
  %592 = vmatpush.bf16.msra.mxu0 0
  %593 = vmatpush.bf16.msra.mxu0 0
  %594 = vmatpush.bf16.msra.mxu0 0
  %595 = vmatpush.bf16.msra.mxu0 %v505
  %596 = vmatpush.bf16.msra.mxu0 %v504
  %597 = vmatmul.bf16.gmra.mxu0 %v517
  %v598 = vpop.f32.mrf.mxu0
  %v599 = vadd.f32 %v550, %v598
  %v600 = vpop.f32.mrf.mxu0
  %v601 = vadd.f32 %v552, %v600
  %602 = vmatmul.bf16.gmra.mxu0 %v520
  %v603 = vpop.f32.mrf.mxu0
  %v604 = vadd.f32 %v555, %v603
  %v605 = vpop.f32.mrf.mxu0
  %v606 = vadd.f32 %v557, %v605
  %607 = vmatmul.bf16.gmra.mxu0 %v523
  %v608 = vpop.f32.mrf.mxu0
  %v609 = vadd.f32 %v560, %v608
  %v610 = vpop.f32.mrf.mxu0
  %v611 = vadd.f32 %v562, %v610
  %612 = vmatmul.bf16.gmra.mxu0 %v526
  %v613 = vpop.f32.mrf.mxu0
  %v614 = vadd.f32 %v565, %v613
  %v615 = vpop.f32.mrf.mxu0
  %v616 = vadd.f32 %v567, %v615
  %617 = vmatmul.bf16.gmra.mxu0 %v529
  %v618 = vpop.f32.mrf.mxu0
  %v619 = vadd.f32 %v570, %v618
  %v620 = vpop.f32.mrf.mxu0
  %v621 = vadd.f32 %v572, %v620
  %622 = vmatmul.bf16.gmra.mxu0 %v532
  %v623 = vpop.f32.mrf.mxu0
  %v624 = vadd.f32 %v575, %v623
  %v625 = vpop.f32.mrf.mxu0
  %v626 = vadd.f32 %v577, %v625
  %627 = vmatmul.bf16.gmra.mxu0 %v535
  %v628 = vpop.f32.mrf.mxu0
  %v629 = vadd.f32 %v580, %v628
  %v630 = vpop.f32.mrf.mxu0
  %v631 = vadd.f32 %v582, %v630
  %632 = vmatmul.bf16.gmra.mxu0 %v538
  %v633 = vpop.f32.mrf.mxu0
  %v634 = vadd.f32 %v585, %v633
  %v635 = vpop.f32.mrf.mxu0
  %v636 = vadd.f32 %v587, %v635
  %637 = vdwg.mxu0
  %v638 = vld [vmem:[%s2] sm:$0xff]
  %v639 = vld [vmem:[%s2 + $0x8] sm:$0xff]
  %v640 = vadd.f32 %v599, %v638
  %v641 = vadd.f32 %v601, %v639
  %v642 = vadd.f32 %v604, %v638
  %v643 = vadd.f32 %v606, %v639
  %v644 = vadd.f32 %v609, %v638
  %v645 = vadd.f32 %v611, %v639
  %v646 = vadd.f32 %v614, %v638
  %v647 = vadd.f32 %v616, %v639
  %v648 = vadd.f32 %v619, %v638
  %v649 = vadd.f32 %v621, %v639
  %v650 = vadd.f32 %v624, %v638
  %v651 = vadd.f32 %v626, %v639
  %v652 = vadd.f32 %v629, %v638
  %v653 = vadd.f32 %v631, %v639
  %v654 = vadd.f32 %v634, %v638
  %v655 = vadd.f32 %v636, %v639
  %v656 = vmax.f32 %v640, %v641
  %v657 = vrot.slane %v656, 4
  %v658 = vmax.f32 %v656, %v657
  %v659 = vrot.slane %v658, 2
  %v660 = vmax.f32 %v658, %v659
  %v661 = vrot.slane %v660, 1
  %v662 = vmax.f32 %v660, %v661
  %v663 = vmax.f32 %v642, %v643
  %v664 = vrot.slane %v663, 4
  %v665 = vmax.f32 %v663, %v664
  %v666 = vrot.slane %v665, 2
  %v667 = vmax.f32 %v665, %v666
  %v668 = vrot.slane %v667, 1
  %v669 = vmax.f32 %v667, %v668
  %v670 = vmax.f32 %v644, %v645
  %v671 = vrot.slane %v670, 4
  %v672 = vmax.f32 %v670, %v671
  %v673 = vrot.slane %v672, 2
  %v674 = vmax.f32 %v672, %v673
  %v675 = vrot.slane %v674, 1
  %v676 = vmax.f32 %v674, %v675
  %v677 = vmax.f32 %v646, %v647
  %v678 = vrot.slane %v677, 4
  %v679 = vmax.f32 %v677, %v678
  %v680 = vrot.slane %v679, 2
  %v681 = vmax.f32 %v679, %v680
  %v682 = vrot.slane %v681, 1
  %v683 = vmax.f32 %v681, %v682
  %v684 = vmax.f32 %v648, %v649
  %v685 = vrot.slane %v684, 4
  %v686 = vmax.f32 %v684, %v685
  %v687 = vrot.slane %v686, 2
  %v688 = vmax.f32 %v686, %v687
  %v689 = vrot.slane %v688, 1
  %v690 = vmax.f32 %v688, %v689
  %v691 = vmax.f32 %v650, %v651
  %v692 = vrot.slane %v691, 4
  %v693 = vmax.f32 %v691, %v692
  %v694 = vrot.slane %v693, 2
  %v695 = vmax.f32 %v693, %v694
  %v696 = vrot.slane %v695, 1
  %v697 = vmax.f32 %v695, %v696
  %v698 = vmax.f32 %v652, %v653
  %v699 = vrot.slane %v698, 4
  %v700 = vmax.f32 %v698, %v699
  %v701 = vrot.slane %v700, 2
  %v702 = vmax.f32 %v700, %v701
  %v703 = vrot.slane %v702, 1
  %v704 = vmax.f32 %v702, %v703
  %v705 = vmax.f32 %v654, %v655
  %v706 = vrot.slane %v705, 4
  %v707 = vmax.f32 %v705, %v706
  %v708 = vrot.slane %v707, 2
  %v709 = vmax.f32 %v707, %v708
  %v710 = vrot.slane %v709, 1
  %v711 = vmax.f32 %v709, %v710
  %v712 = vmax.f32 %v662, 0.0
  %v713 = vmax.f32 %v669, 0.0
  %v714 = vmax.f32 %v676, 0.0
  %v715 = vmax.f32 %v683, 0.0
  %v716 = vmax.f32 %v690, 0.0
  %v717 = vmax.f32 %v697, 0.0
  %v718 = vmax.f32 %v704, 0.0
  %v719 = vmax.f32 %v711, 0.0
  %v720 = vpack.c.bf16 %v712, %v712
  %v721 = vpack.c.bf16 %v713, %v713
  %v722 = vpack.c.bf16 %v714, %v714
  %v723 = vpack.c.bf16 %v715, %v715
  %v724 = vpack.c.bf16 %v716, %v716
  %v725 = vpack.c.bf16 %v717, %v717
  %v726 = vpack.c.bf16 %v718, %v718
  %v727 = vpack.c.bf16 %v719, %v719
  %v728 = vld [vmem:[%s3] sm:$0xf]
  %v729 = vld [vmem:[%s3 + $0x4] sm:$0xf]
  %v730 = vld [vmem:[%s3 + $0x8] sm:$0xf]
  %v731 = vld [vmem:[%s3 + $0xc] sm:$0xf]
  %v732 = vld [vmem:[%s3 + $0x10] sm:$0xf]
  %v733 = vld [vmem:[%s3 + $0x14] sm:$0xf]
  %v734 = vld [vmem:[%s3 + $0x18] sm:$0xf]
  %v735 = vld [vmem:[%s3 + $0x1c] sm:$0xf]
  %v736 = vld [vmem:[%s3 + $0x20] sm:$0xf]
  %v737 = vld [vmem:[%s3 + $0x24] sm:$0xf]
  %v738 = vld [vmem:[%s3 + $0x28] sm:$0xf]
  %v739 = vld [vmem:[%s3 + $0x2c] sm:$0xf]
  %v740 = vld [vmem:[%s3 + $0x30] sm:$0xf]
  %v741 = vld [vmem:[%s3 + $0x34] sm:$0xf]
  %v742 = vld [vmem:[%s3 + $0x38] sm:$0xf]
  %v743 = vld [vmem:[%s3 + $0x3c] sm:$0xf]
  %v744 = vld [vmem:[%s4] sm:$0x1]
  %v746 = vperm.slane %v744, 0
  %v756 = vunpack.c.l.b16 %v720
  %v757 = vunpack.c.l.b16 %v721
  %v758 = vunpack.c.l.b16 %v722
  %v759 = vunpack.c.l.b16 %v723
  %v760 = vunpack.c.l.b16 %v724
  %v761 = vunpack.c.l.b16 %v725
  %v762 = vunpack.c.l.b16 %v726
  %v763 = vunpack.c.l.b16 %v727
  %vm764 = vcmask 1041409
  %v765 = vsel %vm764, %v757, %v756
  %vm766 = vcmask 1042434
  %v767 = vsel %vm766, %v758, %v765
  %vm768 = vcmask 1043459
  %v769 = vsel %vm768, %v759, %v767
  %vm770 = vcmask 1044484
  %v771 = vsel %vm770, %v760, %v769
  %vm772 = vcmask 1045509
  %v773 = vsel %vm772, %v761, %v771
  %vm774 = vcmask 1046534
  %v775 = vsel %vm774, %v762, %v773
  %vm776 = vcmask 1047559
  %v777 = vsel %vm776, %v763, %v775
  %v778 = vpack.c.b16 %v777, %v777
  %v796 = vunpack.c.l.b16 %v728
  %v797 = vunpack.c.l.b16 %v729
  %v798 = vunpack.c.l.b16 %v730
  %v799 = vunpack.c.l.b16 %v731
  %v800 = vunpack.c.l.b16 %v732
  %v801 = vunpack.c.l.b16 %v733
  %v802 = vunpack.c.l.b16 %v734
  %v803 = vunpack.c.l.b16 %v735
  %v804 = vunpack.c.l.b16 %v736
  %v805 = vunpack.c.l.b16 %v737
  %v806 = vunpack.c.l.b16 %v738
  %v807 = vunpack.c.l.b16 %v739
  %v808 = vunpack.c.l.b16 %v740
  %v809 = vunpack.c.l.b16 %v741
  %v810 = vunpack.c.l.b16 %v742
  %v811 = vunpack.c.l.b16 %v743
  %v812 = vpack.c.b16 %v797, %v796
  %v813 = vpack.c.b16 %v799, %v798
  %v814 = vpack.c.b16 %v801, %v800
  %v815 = vpack.c.b16 %v803, %v802
  %v816 = vpack.c.b16 %v805, %v804
  %v817 = vpack.c.b16 %v807, %v806
  %v818 = vpack.c.b16 %v809, %v808
  %v819 = vpack.c.b16 %v811, %v810
  %828 = vmatpush.bf16.msra.mxu0 %v819
  %829 = vmatpush.bf16.msra.mxu0 %v818
  %830 = vmatpush.bf16.msra.mxu0 %v817
  %831 = vmatpush.bf16.msra.mxu0 %v816
  %832 = vmatpush.bf16.msra.mxu0 %v815
  %833 = vmatpush.bf16.msra.mxu0 %v814
  %834 = vmatpush.bf16.msra.mxu0 %v813
  %835 = vmatpush.bf16.msra.mxu0 %v812
  %836 = vmatmul.bf16.gmra.mxu0 %v778
  %v837 = vpop.f32.mrf.mxu0
  %v838 = vadd.f32 %v746, %v837
  %v839 = vpop.f32.mrf.mxu0
  %840 = vdwg.mxu0
  %841 = vst [vmem:[%s5] sm:$0xff] %v838
  // Predicated region
  $region22: #{cnn_text_forward.1} parent=0 // pred_check
    _
  $region23: #{cnn_text_forward.1} parent=0 // pred_check_branch
    %843 = sbr.rel (0) target = $region25
  $region24: #{cnn_text_forward.1} parent=0 // pred_region
    _
  $region25: #{cnn_text_forward.1} parent=0 // pred_fallthru
    _
  // Predicated region
  $region26: #{cnn_text_forward.1} parent=0 // pred_check
    _
  $region27: #{cnn_text_forward.1} parent=0 // pred_check_branch
    %845 = sbr.rel (0) target = $region29
  $region28: #{cnn_text_forward.1} parent=0 // pred_region
    _
  $region29: #{cnn_text_forward.1} parent=0 // pred_fallthru
    _

</llo_original>
